<compile_context>
chip_gen: v5e
topology: v5e:2x2
jax: 0.10.0
libtpu: 0.0.40
codegen_flags: <defaults>
</compile_context>

<pallas_src>
import numpy as np
import jax
import jax.numpy as jnp
from jax import lax
from jax.experimental import pallas as pl
from jax.experimental.pallas import tpu as pltpu


# ----------------------------------------------------------------------------
# Pallas kernel: BiaffineNamedEntityRecognitionDecoder.decode hot path
# ----------------------------------------------------------------------------
def _biaffine_ner_decoder_kernel(
    lens_ref,            # SMEM [B] int32       (scalar prefetch: token_length)
    x_ref,               # VMEM [1, T, H] f32   contextualized embeddings (sentence b)
    gold_ref,            # VMEM [1, T, T] int32 dense gold span labels (sentence b)
    wse_ref,             # VMEM [H, 2*Fa] f32   fused [start | end] MLP weight (augmented)
    bse_ref,             # VMEM [1, 2*Fa] f32   fused [start | end] MLP bias (augmented)
    wxy_ref,             # VMEM [Fa, L*Fa] f32  biaffine weight, wxy[f, o*Fa+g] = W[o,f,g]
    scores_ref,          # VMEM out [1, L*T, T] f32  label-major score planes
    loss_ref,            # VMEM out [1, 1, 1]   f32  per-sentence CE loss (sum reduction)
):
    b = pl.program_id(0)
    T = x_ref.shape[1]
    Fa = wxy_ref.shape[0]              # ffnn_size + 1 (augmented with the ones column)
    L = wxy_ref.shape[1] // Fa

    x = x_ref[0]                                                          # [T, H]

    # Fused TimeDistributed start/end MLPs: one MXU matmul with N = 2*Fa.
    # Each half carries a trailing constant-one column (zero weight, bias 1),
    # which realizes the [.. ; 1] augmentation of the biaffine, i.e. all bias
    # terms fall out of the same matmuls.
    xse = jnp.dot(x, wse_ref[...], preferred_element_type=jnp.float32) + bse_ref[...]
    xsa = xse[:, :Fa]                                                     # [T, Fa]  = [xs ; 1]
    xea_t = jnp.transpose(xse[:, Fa:])                                    # [Fa, T]  = [xe ; 1]^T

    # Stage 1 of the biaffine bilinear form, fused across all labels:
    # t_all[i, o*Fa+g] = sum_f xsa[i,f] * W[o,f,g]
    t_all = jnp.dot(xsa, wxy_ref[...], preferred_element_type=jnp.float32)  # [T, L*Fa]

    # Clamp gold labels like the gather in the reference (defensive vs. summed
    # duplicate spans producing ids >= L).
    gold = jnp.minimum(gold_ref[0], L - 1)                                # [T, T] int32

    # Stage 2 + pass 1 of the masked cross entropy: per-label [T,T] planes are
    # produced, stored lane-dense into the output ref and folded into running
    # max / target stats.  Only one plane is live at a time.
    m = jnp.full((T, T), -jnp.inf, jnp.float32)
    tgt = jnp.zeros((T, T), jnp.float32)
    for o in range(L):                                  # L is small & static -> unrolled
        s_o = jnp.dot(t_all[:, o * Fa:(o + 1) * Fa], xea_t,
                      preferred_element_type=jnp.float32)                 # [T, T]
        scores_ref[0, o * T:(o + 1) * T, :] = s_o
        m = jnp.maximum(m, s_o)
        tgt = tgt + jnp.where(gold == o, s_o, 0.0)

    # Pass 2: sum-exp, re-reading the planes from the output ref (bounded
    # liveness, exactly one exp per element per label).
    ssum = jnp.zeros((T, T), jnp.float32)
    for o in range(L):
        plane = scores_ref[0, o * T:(o + 1) * T, :]
        ssum = ssum + jnp.exp(plane - m)

    # candidate_scores_mask: start valid & end valid & end >= start.
    n = lens_ref[b]
    row_i = lax.broadcasted_iota(jnp.int32, (T, T), 0)
    col_j = lax.broadcasted_iota(jnp.int32, (T, T), 1)
    mask2d = (row_i < n) & (col_j < n) & (col_j >= row_i)

    # Cross entropy with reduction='sum' over the masked candidate spans.
    ce = jnp.log(ssum) + m - tgt                                          # [T, T]
    loss_ref[0] = jnp.sum(jnp.where(mask2d, ce, 0.0), keepdims=True)      # (1, 1)


def biaffine_ner_decode(ctx_emb, sent_lengths, gold_dense, params):
    """Runs the Pallas decoder kernel.

    Returns (scores [B, L, T, T] label-major, loss scalar)."""
    B, T, H = ctx_emb.shape
    F = params["ws"].shape[1]
    Fa = F + 1
    w_full = params["w_biaffine"]                       # [L, Fa, Fa]
    L = w_full.shape[0]

    # Contraction-dim-first layout for the fused stage-1 matmul:
    #   wxy2d[f, o*Fa + g] = W[o, f, g]
    wxy2d = jnp.transpose(w_full, (1, 0, 2)).reshape(Fa, L * Fa)

    # Fused (start | end) MLP weights, each augmented with a constant-one
    # output column (zero weight, bias 1) so the biaffine bias terms come out
    # of the same matmuls.
    zcol = jnp.zeros((H, 1), jnp.float32)
    wse = jnp.concatenate([params["ws"], zcol, params["we"], zcol], axis=1)   # [H, 2*Fa]
    one = jnp.ones((1,), jnp.float32)
    bse = jnp.concatenate([params["bs"], one, params["be"], one])[None, :]    # [1, 2*Fa]

    # TODO(synk): for production shapes, pad T (and F) to multiples of 128 and
    # tile the score plane over T (v7x has only 64 MiB VMEM); on v6e an
    # explicit vmem_limit_bytes would be needed for large untiled T.
    kernel = pl.pallas_call(
        _biaffine_ner_decoder_kernel,
        out_shape=[
            jax.ShapeDtypeStruct((B, L * T, T), jnp.float32),
            jax.ShapeDtypeStruct((B, 1, 1), jnp.float32),
        ],
        grid_spec=pltpu.PrefetchScalarGridSpec(
            num_scalar_prefetch=1,
            grid=(B,),
            in_specs=[
                pl.BlockSpec((1, T, H), lambda b, lens: (b, 0, 0)),      # ctx embeddings
                pl.BlockSpec((1, T, T), lambda b, lens: (b, 0, 0)),      # dense gold labels
                pl.BlockSpec((H, 2 * Fa), lambda b, lens: (0, 0)),       # fused MLP weight
                pl.BlockSpec((1, 2 * Fa), lambda b, lens: (0, 0)),       # fused MLP bias
                pl.BlockSpec((Fa, L * Fa), lambda b, lens: (0, 0)),      # biaffine weight
            ],
            out_specs=[
                pl.BlockSpec((1, L * T, T), lambda b, lens: (b, 0, 0)),  # scores (lane-dense)
                pl.BlockSpec((1, 1, 1), lambda b, lens: (b, 0, 0)),      # per-sentence loss
            ],
        ),
        compiler_params=pltpu.CompilerParams(
            dimension_semantics=("parallel",)),                           # batch shards across TCs
    )
    scores_flat, loss_per_b = kernel(sent_lengths, ctx_emb, gold_dense, wse, bse, wxy2d)
    scores_lttt = scores_flat.reshape(B, L, T, T)       # pure metadata reshape, no HBM transpose
    return scores_lttt, jnp.sum(loss_per_b)


# ----------------------------------------------------------------------------
# Plain-JAX glue reproducing the surrounding module
# ----------------------------------------------------------------------------
def get_dense_span_labels(starts, ends, labels, max_sent_length):
    """JAX port of get_dense_span_labels (torch sparse .to_dense() sums dups)."""
    B, S = starts.shape
    sent = jnp.broadcast_to(jnp.arange(B, dtype=jnp.int32)[:, None], (B, S))
    dense = jnp.zeros((B, max_sent_length, max_sent_length), jnp.int32)
    return dense.at[sent.reshape(-1), starts.reshape(-1), ends.reshape(-1)].add(
        labels.reshape(-1))


def model_forward(batch, params):
    """BiaffineNamedEntityRecognitionModel.forward (eval mode)."""
    sent_lengths = batch["token_length"]
    token_ids = batch["token_ids"]
    B, T = token_ids.shape

    masks = jnp.arange(T)[None, :] < sent_lengths[:, None]               # [B, T]

    # embed stand-in (injected nn.Module in PyTorch): embedding table lookup.
    raw = params["embed_table"][token_ids]                               # [B, T, E]
    # lexical dropout: eval mode (training=False) -> identity.
    # TODO(synk): context_layer is an injected nn.Module (e.g. BiLSTM); a
    # deterministic linear+tanh projection stands in for it here.
    ctx = jnp.tanh(raw @ params["wc_ctx"] + params["bc_ctx"])            # [B, T, H]

    gold_dense = get_dense_span_labels(
        batch["begin_offset"], batch["end_offset"], batch["label_id"], T)

    scores_lttt, loss = biaffine_ner_decode(
        ctx.astype(jnp.float32), sent_lengths, gold_dense, params)

    i_idx = jnp.arange(T)[:, None]
    j_idx = jnp.arange(T)[None, :]
    cand_mask = masks[:, :, None] & masks[:, None, :] & (j_idx >= i_idx)[None]

    # Scores are kept label-major [B, L, T, T] (PyTorch layout before the
    # .permute([0,2,3,1])); the mask broadcasts over L, so no full-tensor HBM
    # transpose is paid.  The PyTorch-style ragged scores[mask] selection is
    # done host-side in __main__.
    return {"candidate_ner_scores": scores_lttt,
            "candidate_scores_mask": cand_mask,
            "loss": loss}


def reference_decode(ctx, sent_lengths, gold_dense, params):
    """Pure-JAX reference of the decoder (for correctness checking)."""
    xs = ctx @ params["ws"] + params["bs"]
    xe = ctx @ params["we"] + params["be"]
    ones = jnp.ones(xs.shape[:-1] + (1,), xs.dtype)
    xsa = jnp.concatenate([xs, ones], -1)
    xea = jnp.concatenate([xe, ones], -1)
    s = jnp.einsum("bxi,oij,byj->boxy", xsa, params["w_biaffine"], xea)
    scores = jnp.transpose(s, (0, 2, 3, 1))                              # [B,T,T,L]
    B, T = gold_dense.shape[:2]
    masks = jnp.arange(T)[None, :] < sent_lengths[:, None]
    i_idx = jnp.arange(T)[:, None]
    j_idx = jnp.arange(T)[None, :]
    cmask = masks[:, :, None] & masks[:, None, :] & (j_idx >= i_idx)[None]
    logz = jax.scipy.special.logsumexp(scores, axis=-1)
    tgt = jnp.take_along_axis(scores, gold_dense[..., None], axis=-1)[..., 0]
    loss = jnp.sum(jnp.where(cmask, logz - tgt, 0.0))
    return scores, loss


# ----------------------------------------------------------------------------
# Deterministic parameter init + example run
# ----------------------------------------------------------------------------
if __name__ == "__main__":
    B, T = 2, 8               # sentences, max sentence length
    VOCAB, E = 50, 16         # embed stand-in
    H = 32                    # context_layer output dim (hidden_size)
    F = 32                    # ffnn_size
    L = 5                     # label_space_size
    S = 3                     # max gold spans per sentence

    key = jax.random.PRNGKey(0)
    ks = jax.random.split(key, 9)
    scale = 0.1
    # Note: nn.Linear stores [out,in] and does x @ W.T; we store [in,out]
    # directly (same math, synthetic deterministic init).
    params = {
        "embed_table": jax.random.normal(ks[0], (VOCAB, E), jnp.float32) * scale,
        "wc_ctx": jax.random.normal(ks[1], (E, H), jnp.float32) * scale,
        "bc_ctx": jax.random.normal(ks[2], (H,), jnp.float32) * 0.01,
        "ws": jax.random.normal(ks[3], (H, F), jnp.float32) * scale,
        "bs": jax.random.normal(ks[4], (F,), jnp.float32) * 0.01,
        "we": jax.random.normal(ks[5], (H, F), jnp.float32) * scale,
        "be": jax.random.normal(ks[6], (F,), jnp.float32) * 0.01,
        "w_biaffine": jax.random.normal(ks[7], (L, F + 1, F + 1), jnp.float32) * scale,
    }

    token_ids = jax.random.randint(ks[8], (B, T), 0, VOCAB, dtype=jnp.int32)
    batch = {
        "token_ids": token_ids,
        "token_length": jnp.array([8, 5], jnp.int32),
        "begin_offset": jnp.array([[1, 4, 0], [0, 0, 0]], jnp.int32),
        "end_offset":   jnp.array([[3, 4, 0], [2, 0, 0]], jnp.int32),
        "label_id":     jnp.array([[2, 1, 0], [3, 0, 0]], jnp.int32),
    }

    out = model_forward(batch, params)
    jax.block_until_ready(out["loss"])

    # Check the Pallas kernel against a pure-JAX reference.
    raw = params["embed_table"][token_ids]
    ctx = jnp.tanh(raw @ params["wc_ctx"] + params["bc_ctx"]).astype(jnp.float32)
    gold_dense = get_dense_span_labels(
        batch["begin_offset"], batch["end_offset"], batch["label_id"], T)
    ref_scores, ref_loss = reference_decode(
        ctx, batch["token_length"], gold_dense, params)

    # Kernel emits label-major [B, L, T, T]; move L to the last axis on host
    # for comparison with the PyTorch-layout reference.
    got_scores = np.moveaxis(np.asarray(out["candidate_ner_scores"]), 1, -1)
    np.testing.assert_allclose(got_scores, np.asarray(ref_scores),
                               rtol=1e-4, atol=1e-4)
    np.testing.assert_allclose(np.asarray(out["loss"]), np.asarray(ref_loss),
                               rtol=1e-4, atol=1e-4)

    # PyTorch-style ragged candidate scores (boolean indexing) done on host.
    cand = got_scores[np.asarray(out["candidate_scores_mask"])]
    assert cand.shape == (8 * 9 // 2 + 5 * 6 // 2, L)

    print("KERNEL_OK")
</pallas_src>

<mosaic_0001>
module attributes {stable_mosaic.version = 11 : i64} {
  func.func @_biaffine_ner_decoder_kernel(%arg0: i32, %arg1: memref<2xi32, #tpu.memory_space<smem>>, %arg2: memref<1x8x32xf32, #tpu.memory_space<vmem>>, %arg3: memref<1x8x8xi32, #tpu.memory_space<vmem>>, %arg4: memref<32x66xf32, #tpu.memory_space<vmem>>, %arg5: memref<1x66xf32, #tpu.memory_space<vmem>>, %arg6: memref<33x165xf32, #tpu.memory_space<vmem>>, %arg7: memref<1x40x8xf32, #tpu.memory_space<vmem>>, %arg8: memref<1x1x1xf32, #tpu.memory_space<vmem>>) attributes {dimension_semantics = [#tpu.dimension_semantics<parallel>], iteration_bounds = array<i64: 2>, scalar_prefetch = 1 : i64, scratch_operands = 0 : i64, tpu.core_type = #tpu.core_type<tc>, window_params = [{transform_indices = @transform_0, window_bounds = array<i64: 1, 8, 32>}, {transform_indices = @transform_1, window_bounds = array<i64: 1, 8, 8>}, {pipeline_mode = #tpu.pipeline_mode<synchronous>, transform_indices = @transform_2, window_bounds = array<i64: 32, 66>}, {pipeline_mode = #tpu.pipeline_mode<synchronous>, transform_indices = @transform_3, window_bounds = array<i64: 1, 66>}, {pipeline_mode = #tpu.pipeline_mode<synchronous>, transform_indices = @transform_4, window_bounds = array<i64: 33, 165>}, {transform_indices = @transform_5, window_bounds = array<i64: 1, 40, 8>}, {transform_indices = @transform_6, window_bounds = array<i64: 1, 1, 1>}]} {
    %c0 = arith.constant 0 : index
    %c0_0 = arith.constant 0 : index
    %c0_1 = arith.constant 0 : index
    %0 = vector.load %arg2[%c0, %c0_0, %c0_1] : memref<1x8x32xf32, #tpu.memory_space<vmem>>, vector<1x8x32xf32>
    %1 = vector.shape_cast %0 : vector<1x8x32xf32> to vector<8x32xf32>
    %c0_2 = arith.constant 0 : index
    %c0_3 = arith.constant 0 : index
    %2 = vector.load %arg4[%c0_2, %c0_3] : memref<32x66xf32, #tpu.memory_space<vmem>>, vector<32x66xf32>
    %cst = arith.constant dense<0.000000e+00> : vector<8x66xf32>
    %3 = tpu.matmul %1, %2, %cst {dimension_numbers = #tpu.dot_dimension_numbers<[1], [0], [0], [1], [0, 0, 1, 1], [], []>} : vector<8x32xf32>, vector<32x66xf32>, vector<8x66xf32> -> vector<8x66xf32>
    %c0_4 = arith.constant 0 : index
    %c0_5 = arith.constant 0 : index
    %4 = vector.load %arg5[%c0_4, %c0_5] : memref<1x66xf32, #tpu.memory_space<vmem>>, vector<1x66xf32>
    %5 = vector.broadcast %4 : vector<1x66xf32> to vector<8x66xf32>
    %6 = arith.addf %3, %5 : vector<8x66xf32>
    %7 = vector.extract_strided_slice %6 {offsets = [0, 0], sizes = [8, 33], strides = [1, 1]} : vector<8x66xf32> to vector<8x33xf32>
    %8 = vector.extract_strided_slice %6 {offsets = [0, 33], sizes = [8, 33], strides = [1, 1]} : vector<8x66xf32> to vector<8x33xf32>
    %9 = tpu.transpose %8, [1, 0] : vector<8x33xf32> -> vector<33x8xf32>
    %c0_6 = arith.constant 0 : index
    %c0_7 = arith.constant 0 : index
    %10 = vector.load %arg6[%c0_6, %c0_7] : memref<33x165xf32, #tpu.memory_space<vmem>>, vector<33x165xf32>
    %cst_8 = arith.constant dense<0.000000e+00> : vector<8x165xf32>
    %11 = tpu.matmul %7, %10, %cst_8 {dimension_numbers = #tpu.dot_dimension_numbers<[1], [0], [0], [1], [0, 0, 1, 1], [], []>} : vector<8x33xf32>, vector<33x165xf32>, vector<8x165xf32> -> vector<8x165xf32>
    %c0_9 = arith.constant 0 : index
    %c0_10 = arith.constant 0 : index
    %c0_11 = arith.constant 0 : index
    %12 = vector.load %arg3[%c0_9, %c0_10, %c0_11] : memref<1x8x8xi32, #tpu.memory_space<vmem>>, vector<1x8x8xi32>
    %13 = vector.shape_cast %12 : vector<1x8x8xi32> to vector<8x8xi32>
    %c4_i32 = arith.constant 4 : i32
    %14 = vector.broadcast %c4_i32 : i32 to vector<8x8xi32>
    %15 = arith.minsi %13, %14 : vector<8x8xi32>
    %cst_12 = arith.constant 0xFF800000 : f32
    %16 = vector.broadcast %cst_12 : f32 to vector<8x8xf32>
    %cst_13 = arith.constant 0.000000e+00 : f32
    %17 = vector.broadcast %cst_13 : f32 to vector<8x8xf32>
    %18 = vector.extract_strided_slice %11 {offsets = [0, 0], sizes = [8, 33], strides = [1, 1]} : vector<8x165xf32> to vector<8x33xf32>
    %cst_14 = arith.constant dense<0.000000e+00> : vector<8x8xf32>
    %19 = tpu.matmul %18, %9, %cst_14 {dimension_numbers = #tpu.dot_dimension_numbers<[1], [0], [0], [1], [0, 0, 1, 1], [], []>} : vector<8x33xf32>, vector<33x8xf32>, vector<8x8xf32> -> vector<8x8xf32>
    %c0_15 = arith.constant 0 : index
    %c0_16 = arith.constant 0 : index
    %c0_17 = arith.constant 0 : index
    %20 = vector.load %arg7[%c0_15, %c0_16, %c0_17] : memref<1x40x8xf32, #tpu.memory_space<vmem>>, vector<1x8x8xf32>
    %21 = vector.shape_cast %20 : vector<1x8x8xf32> to vector<8x8xf32>
    %22 = vector.shape_cast %19 : vector<8x8xf32> to vector<1x8x8xf32>
    tpu.vector_store %arg7[%c0_15, %c0_16, %c0_17], %22 {strides = array<i32>} : memref<1x40x8xf32, #tpu.memory_space<vmem>>, vector<1x8x8xf32>,
    %23 = arith.maximumf %16, %19 : vector<8x8xf32>
    %c0_i32 = arith.constant 0 : i32
    %24 = vector.broadcast %c0_i32 : i32 to vector<8x8xi32>
    %25 = arith.cmpi eq, %15, %24 : vector<8x8xi32>
    %cst_18 = arith.constant 0.000000e+00 : f32
    %26 = vector.broadcast %cst_18 : f32 to vector<8x8xf32>
    %27 = arith.select %25, %19, %26 : vector<8x8xi1>, vector<8x8xf32>
    %28 = arith.addf %17, %27 : vector<8x8xf32>
    %29 = vector.extract_strided_slice %11 {offsets = [0, 33], sizes = [8, 33], strides = [1, 1]} : vector<8x165xf32> to vector<8x33xf32>
    %cst_19 = arith.constant dense<0.000000e+00> : vector<8x8xf32>
    %30 = tpu.matmul %29, %9, %cst_19 {dimension_numbers = #tpu.dot_dimension_numbers<[1], [0], [0], [1], [0, 0, 1, 1], [], []>} : vector<8x33xf32>, vector<33x8xf32>, vector<8x8xf32> -> vector<8x8xf32>
    %c0_20 = arith.constant 0 : index
    %c8 = arith.constant 8 : index
    %c0_21 = arith.constant 0 : index
    %31 = vector.load %arg7[%c0_20, %c8, %c0_21] : memref<1x40x8xf32, #tpu.memory_space<vmem>>, vector<1x8x8xf32>
    %32 = vector.shape_cast %31 : vector<1x8x8xf32> to vector<8x8xf32>
    %33 = vector.shape_cast %30 : vector<8x8xf32> to vector<1x8x8xf32>
    tpu.vector_store %arg7[%c0_20, %c8, %c0_21], %33 {strides = array<i32>} : memref<1x40x8xf32, #tpu.memory_space<vmem>>, vector<1x8x8xf32>,
    %34 = arith.maximumf %23, %30 : vector<8x8xf32>
    %c1_i32 = arith.constant 1 : i32
    %35 = vector.broadcast %c1_i32 : i32 to vector<8x8xi32>
    %36 = arith.cmpi eq, %15, %35 : vector<8x8xi32>
    %cst_22 = arith.constant 0.000000e+00 : f32
    %37 = vector.broadcast %cst_22 : f32 to vector<8x8xf32>
    %38 = arith.select %36, %30, %37 : vector<8x8xi1>, vector<8x8xf32>
    %39 = arith.addf %28, %38 : vector<8x8xf32>
    %40 = vector.extract_strided_slice %11 {offsets = [0, 66], sizes = [8, 33], strides = [1, 1]} : vector<8x165xf32> to vector<8x33xf32>
    %cst_23 = arith.constant dense<0.000000e+00> : vector<8x8xf32>
    %41 = tpu.matmul %40, %9, %cst_23 {dimension_numbers = #tpu.dot_dimension_numbers<[1], [0], [0], [1], [0, 0, 1, 1], [], []>} : vector<8x33xf32>, vector<33x8xf32>, vector<8x8xf32> -> vector<8x8xf32>
    %c0_24 = arith.constant 0 : index
    %c16 = arith.constant 16 : index
    %c0_25 = arith.constant 0 : index
    %42 = vector.load %arg7[%c0_24, %c16, %c0_25] : memref<1x40x8xf32, #tpu.memory_space<vmem>>, vector<1x8x8xf32>
    %43 = vector.shape_cast %42 : vector<1x8x8xf32> to vector<8x8xf32>
    %44 = vector.shape_cast %41 : vector<8x8xf32> to vector<1x8x8xf32>
    tpu.vector_store %arg7[%c0_24, %c16, %c0_25], %44 {strides = array<i32>} : memref<1x40x8xf32, #tpu.memory_space<vmem>>, vector<1x8x8xf32>,
    %45 = arith.maximumf %34, %41 : vector<8x8xf32>
    %c2_i32 = arith.constant 2 : i32
    %46 = vector.broadcast %c2_i32 : i32 to vector<8x8xi32>
    %47 = arith.cmpi eq, %15, %46 : vector<8x8xi32>
    %cst_26 = arith.constant 0.000000e+00 : f32
    %48 = vector.broadcast %cst_26 : f32 to vector<8x8xf32>
    %49 = arith.select %47, %41, %48 : vector<8x8xi1>, vector<8x8xf32>
    %50 = arith.addf %39, %49 : vector<8x8xf32>
    %51 = vector.extract_strided_slice %11 {offsets = [0, 99], sizes = [8, 33], strides = [1, 1]} : vector<8x165xf32> to vector<8x33xf32>
    %cst_27 = arith.constant dense<0.000000e+00> : vector<8x8xf32>
    %52 = tpu.matmul %51, %9, %cst_27 {dimension_numbers = #tpu.dot_dimension_numbers<[1], [0], [0], [1], [0, 0, 1, 1], [], []>} : vector<8x33xf32>, vector<33x8xf32>, vector<8x8xf32> -> vector<8x8xf32>
    %c0_28 = arith.constant 0 : index
    %c24 = arith.constant 24 : index
    %c0_29 = arith.constant 0 : index
    %53 = vector.load %arg7[%c0_28, %c24, %c0_29] : memref<1x40x8xf32, #tpu.memory_space<vmem>>, vector<1x8x8xf32>
    %54 = vector.shape_cast %53 : vector<1x8x8xf32> to vector<8x8xf32>
    %55 = vector.shape_cast %52 : vector<8x8xf32> to vector<1x8x8xf32>
    tpu.vector_store %arg7[%c0_28, %c24, %c0_29], %55 {strides = array<i32>} : memref<1x40x8xf32, #tpu.memory_space<vmem>>, vector<1x8x8xf32>,
    %56 = arith.maximumf %45, %52 : vector<8x8xf32>
    %c3_i32 = arith.constant 3 : i32
    %57 = vector.broadcast %c3_i32 : i32 to vector<8x8xi32>
    %58 = arith.cmpi eq, %15, %57 : vector<8x8xi32>
    %cst_30 = arith.constant 0.000000e+00 : f32
    %59 = vector.broadcast %cst_30 : f32 to vector<8x8xf32>
    %60 = arith.select %58, %52, %59 : vector<8x8xi1>, vector<8x8xf32>
    %61 = arith.addf %50, %60 : vector<8x8xf32>
    %62 = vector.extract_strided_slice %11 {offsets = [0, 132], sizes = [8, 33], strides = [1, 1]} : vector<8x165xf32> to vector<8x33xf32>
    %cst_31 = arith.constant dense<0.000000e+00> : vector<8x8xf32>
    %63 = tpu.matmul %62, %9, %cst_31 {dimension_numbers = #tpu.dot_dimension_numbers<[1], [0], [0], [1], [0, 0, 1, 1], [], []>} : vector<8x33xf32>, vector<33x8xf32>, vector<8x8xf32> -> vector<8x8xf32>
    %c0_32 = arith.constant 0 : index
    %c32 = arith.constant 32 : index
    %c0_33 = arith.constant 0 : index
    %64 = vector.load %arg7[%c0_32, %c32, %c0_33] : memref<1x40x8xf32, #tpu.memory_space<vmem>>, vector<1x8x8xf32>
    %65 = vector.shape_cast %64 : vector<1x8x8xf32> to vector<8x8xf32>
    %66 = vector.shape_cast %63 : vector<8x8xf32> to vector<1x8x8xf32>
    tpu.vector_store %arg7[%c0_32, %c32, %c0_33], %66 {strides = array<i32>} : memref<1x40x8xf32, #tpu.memory_space<vmem>>, vector<1x8x8xf32>,
    %67 = arith.maximumf %56, %63 : vector<8x8xf32>
    %c4_i32_34 = arith.constant 4 : i32
    %68 = vector.broadcast %c4_i32_34 : i32 to vector<8x8xi32>
    %69 = arith.cmpi eq, %15, %68 : vector<8x8xi32>
    %cst_35 = arith.constant 0.000000e+00 : f32
    %70 = vector.broadcast %cst_35 : f32 to vector<8x8xf32>
    %71 = arith.select %69, %63, %70 : vector<8x8xi1>, vector<8x8xf32>
    %72 = arith.addf %61, %71 : vector<8x8xf32>
    %cst_36 = arith.constant 0.000000e+00 : f32
    %73 = vector.broadcast %cst_36 : f32 to vector<8x8xf32>
    %c0_37 = arith.constant 0 : index
    %c0_38 = arith.constant 0 : index
    %c0_39 = arith.constant 0 : index
    %74 = vector.load %arg7[%c0_37, %c0_38, %c0_39] : memref<1x40x8xf32, #tpu.memory_space<vmem>>, vector<1x8x8xf32>
    %75 = vector.shape_cast %74 : vector<1x8x8xf32> to vector<8x8xf32>
    %76 = arith.subf %75, %67 : vector<8x8xf32>
    %77 = math.exp %76 : vector<8x8xf32>
    %78 = arith.addf %73, %77 : vector<8x8xf32>
    %c0_40 = arith.constant 0 : index
    %c8_41 = arith.constant 8 : index
    %c0_42 = arith.constant 0 : index
    %79 = vector.load %arg7[%c0_40, %c8_41, %c0_42] : memref<1x40x8xf32, #tpu.memory_space<vmem>>, vector<1x8x8xf32>
    %80 = vector.shape_cast %79 : vector<1x8x8xf32> to vector<8x8xf32>
    %81 = arith.subf %80, %67 : vector<8x8xf32>
    %82 = math.exp %81 : vector<8x8xf32>
    %83 = arith.addf %78, %82 : vector<8x8xf32>
    %c0_43 = arith.constant 0 : index
    %c16_44 = arith.constant 16 : index
    %c0_45 = arith.constant 0 : index
    %84 = vector.load %arg7[%c0_43, %c16_44, %c0_45] : memref<1x40x8xf32, #tpu.memory_space<vmem>>, vector<1x8x8xf32>
    %85 = vector.shape_cast %84 : vector<1x8x8xf32> to vector<8x8xf32>
    %86 = arith.subf %85, %67 : vector<8x8xf32>
    %87 = math.exp %86 : vector<8x8xf32>
    %88 = arith.addf %83, %87 : vector<8x8xf32>
    %c0_46 = arith.constant 0 : index
    %c24_47 = arith.constant 24 : index
    %c0_48 = arith.constant 0 : index
    %89 = vector.load %arg7[%c0_46, %c24_47, %c0_48] : memref<1x40x8xf32, #tpu.memory_space<vmem>>, vector<1x8x8xf32>
    %90 = vector.shape_cast %89 : vector<1x8x8xf32> to vector<8x8xf32>
    %91 = arith.subf %90, %67 : vector<8x8xf32>
    %92 = math.exp %91 : vector<8x8xf32>
    %93 = arith.addf %88, %92 : vector<8x8xf32>
    %c0_49 = arith.constant 0 : index
    %c32_50 = arith.constant 32 : index
    %c0_51 = arith.constant 0 : index
    %94 = vector.load %arg7[%c0_49, %c32_50, %c0_51] : memref<1x40x8xf32, #tpu.memory_space<vmem>>, vector<1x8x8xf32>
    %95 = vector.shape_cast %94 : vector<1x8x8xf32> to vector<8x8xf32>
    %96 = arith.subf %95, %67 : vector<8x8xf32>
    %97 = math.exp %96 : vector<8x8xf32>
    %98 = arith.addf %93, %97 : vector<8x8xf32>
    %99 = arith.index_cast %arg0 : i32 to index
    %100 = memref.load %arg1[%99] : memref<2xi32, #tpu.memory_space<smem>>
    %101 = tpu.iota {dimensions = array<i32: 0>} : vector<8x8xi32>
    %102 = tpu.iota {dimensions = array<i32: 1>} : vector<8x8xi32>
    %103 = vector.broadcast %100 : i32 to vector<8x8xi32>
    %104 = arith.cmpi slt, %101, %103 : vector<8x8xi32>
    %105 = vector.broadcast %100 : i32 to vector<8x8xi32>
    %106 = arith.cmpi slt, %102, %105 : vector<8x8xi32>
    %107 = arith.andi %104, %106 : vector<8x8xi1>
    %108 = arith.cmpi sge, %102, %101 : vector<8x8xi32>
    %109 = arith.andi %107, %108 : vector<8x8xi1>
    %110 = math.log %98 : vector<8x8xf32>
    %111 = arith.addf %110, %67 : vector<8x8xf32>
    %112 = arith.subf %111, %72 : vector<8x8xf32>
    %cst_52 = arith.constant 0.000000e+00 : f32
    %113 = vector.broadcast %cst_52 : f32 to vector<8x8xf32>
    %114 = arith.select %109, %112, %113 : vector<8x8xi1>, vector<8x8xf32>
    %115 = vector.shape_cast %114 : vector<8x8xf32> to vector<1x8x8xf32>
    %cst_53 = arith.constant dense<0.000000e+00> : vector<1xf32>
    %116 = vector.multi_reduction <add>, %115, %cst_53 [1, 2] : vector<1x8x8xf32> to vector<1xf32>
    %117 = vector.shape_cast %116 : vector<1xf32> to vector<1x1x1xf32>
    %118 = vector.extract %117[0, 0, 0] : f32 from vector<1x1x1xf32>
    %119 = vector.broadcast %118 : f32 to vector<1x1xf32>
    %c0_54 = arith.constant 0 : index
    %c0_55 = arith.constant 0 : index
    %c0_56 = arith.constant 0 : index
    %120 = vector.load %arg8[%c0_54, %c0_55, %c0_56] : memref<1x1x1xf32, #tpu.memory_space<vmem>>, vector<1x1x1xf32>
    %121 = vector.shape_cast %120 : vector<1x1x1xf32> to vector<1x1xf32>
    %122 = vector.shape_cast %119 : vector<1x1xf32> to vector<1x1x1xf32>
    tpu.vector_store %arg8[%c0_54, %c0_55, %c0_56], %122 {strides = array<i32>} : memref<1x1x1xf32, #tpu.memory_space<vmem>>, vector<1x1x1xf32>,
    return
  }
  func.func @transform_0(%arg0: i32, %arg1: memref<2xi32, #tpu.memory_space<smem>>) -> (i32, i32, i32) {
    %c0_i32 = arith.constant 0 : i32
    %c0_i32_0 = arith.constant 0 : i32
    %c0_i32_1 = arith.constant 0 : i32
    return %arg0, %c0_i32, %c0_i32_0 : i32, i32, i32
  }
  func.func @transform_1(%arg0: i32, %arg1: memref<2xi32, #tpu.memory_space<smem>>) -> (i32, i32, i32) {
    %c0_i32 = arith.constant 0 : i32
    %c0_i32_0 = arith.constant 0 : i32
    %c0_i32_1 = arith.constant 0 : i32
    return %arg0, %c0_i32, %c0_i32_0 : i32, i32, i32
  }
  func.func @transform_2(%arg0: i32, %arg1: memref<2xi32, #tpu.memory_space<smem>>) -> (i32, i32) {
    %c0_i32 = arith.constant 0 : i32
    %c0_i32_0 = arith.constant 0 : i32
    %c0_i32_1 = arith.constant 0 : i32
    return %c0_i32, %c0_i32_0 : i32, i32
  }
  func.func @transform_3(%arg0: i32, %arg1: memref<2xi32, #tpu.memory_space<smem>>) -> (i32, i32) {
    %c0_i32 = arith.constant 0 : i32
    %c0_i32_0 = arith.constant 0 : i32
    %c0_i32_1 = arith.constant 0 : i32
    return %c0_i32, %c0_i32_0 : i32, i32
  }
  func.func @transform_4(%arg0: i32, %arg1: memref<2xi32, #tpu.memory_space<smem>>) -> (i32, i32) {
    %c0_i32 = arith.constant 0 : i32
    %c0_i32_0 = arith.constant 0 : i32
    %c0_i32_1 = arith.constant 0 : i32
    return %c0_i32, %c0_i32_0 : i32, i32
  }
  func.func @transform_5(%arg0: i32, %arg1: memref<2xi32, #tpu.memory_space<smem>>) -> (i32, i32, i32) {
    %c0_i32 = arith.constant 0 : i32
    %c0_i32_0 = arith.constant 0 : i32
    %c0_i32_1 = arith.constant 0 : i32
    return %arg0, %c0_i32, %c0_i32_0 : i32, i32, i32
  }
  func.func @transform_6(%arg0: i32, %arg1: memref<2xi32, #tpu.memory_space<smem>>) -> (i32, i32, i32) {
    %c0_i32 = arith.constant 0 : i32
    %c0_i32_0 = arith.constant 0 : i32
    %c0_i32_1 = arith.constant 0 : i32
    return %arg0, %c0_i32, %c0_i32_0 : i32, i32, i32
  }
}

</mosaic_0001>

<llo_original>
// kernel: tpu_custom_call.1
$region0: #{tpu_custom_call.1}
  #allocation0 [shape = 'u32[]', space=smem, size = 0x4, offset = 0x4, fixed_abs, tag = 'smem constant byte address 0x4 - core index']
  #allocation1 [shape = 'u32[72,128]{1,0:T(1,128)}', space=vmem, size = 0x9000, scoped, tag = 'internal scratch']
  #allocation2 [shape = 's32[1]{0}', space=sflag, size = 0x4, scoped, tag = 'scoped memory for tpu_custom_call.1']
  #allocation3 [shape = 'u8[512]{0}', space=smem, size = 0x200, scoped, tag = 'prefetched SMEM operand 0']
  %s0 = inlined_call_operand.hbm [shape: s32[2], index: 0, kind: input, shape index: {}]
  %s1 = inlined_call_operand.hbm [shape: f32[2,8,32], index: 1, kind: input, shape index: {}]
  %s2 = inlined_call_operand.hbm [shape: s32[2,8,8], index: 2, kind: input, shape index: {}]
  %s3 = inlined_call_operand.hbm [shape: f32[32,66], index: 3, kind: input, shape index: {}]
  %s4 = inlined_call_operand.vmem [shape: f32[1,66], index: 4, kind: input, shape index: {}]
  %s5 = inlined_call_operand.hbm [shape: f32[33,165], index: 5, kind: input, shape index: {}]
  %s6 = inlined_call_operand.vmem [shape: f32[2,40,8], index: 6, kind: output, shape index: {0}]
  %s7 = inlined_call_operand.vmem [shape: f32[2,1,1], index: 7, kind: output, shape index: {1}]
  %8 = xla_tuple %s6, %s7
  %s9 = sld [smem:[#allocation0]]
  $region77: #{tpu_custom_call.1} parent=0
    _
  %s11 = ssub.s32 1, %s9
  %s12 = scalar_select 0, %s11, %s9
  %s14 = sshll.u32 %s0, 4
  %s15 = int_to_ptr.hbm [resolvable:$true] %s14
  %17 = dma.hbm_to_smem %s15, 16, [#allocation3], [#allocation2]
  %19 = dma.done [#allocation2], 16
  %20 = sfence
  $region1: #{tpu_custom_call.1} parent=0
    #allocation4 [shape = 'u8[8192]{0}', space=vmem, size = 0x2000, scoped, tag = 'input window, operand 1']
    #allocation5 [shape = 's32[2]{0}', space=sflag, size = 0x8, scoped, tag = 'scoped memory for tpu_custom_call.1']
    #allocation6 [shape = 'u8[8192]{0}', space=vmem, size = 0x2000, scoped, tag = 'input window, operand 2']
    #allocation7 [shape = 's32[2]{0}', space=sflag, size = 0x8, scoped, tag = 'scoped memory for tpu_custom_call.1']
    #allocation8 [shape = 'u8[16384]{0}', space=vmem, size = 0x4000, scoped, tag = 'input window, operand 3, single buffered']
    #allocation9 [shape = 'u8[40960]{0}', space=vmem, size = 0xa000, scoped, tag = 'input window, operand 5, single buffered']
    #allocation10 [shape = 's32[1]{0}', space=sflag, size = 0x4, scoped, tag = 'scoped memory for tpu_custom_call.1']
    %21 = vsyncpa [#allocation5], 0
    %s22 = scalar_lea.sflag [#allocation5], 1
    %23 = vsyncpa %s22, 0
    %24 = vsyncpa [#allocation7], 0
    %s25 = scalar_lea.sflag [#allocation7], 1
    %26 = vsyncpa %s25, 0
    %27 = vsyncpa [#allocation10], 0
    loop: start=0, step=1, limit=4
    $region2: #{tpu_custom_call.1} parent=1 // loop_pre_header
      _
    $region3: #{tpu_custom_call.1} parent=1 // loop_header
      %s29 = sphi 0, %s33
      %p30 = scmp.ge.s32.totalorder %s29, 4
      %s39 = sphi 0, %s41
      %s42 = sphi 0, %s39
      %s43 = sphi 0, %s42
      %s59 = sphi 0, %s43
      %s65 = sphi 0, %s67
      %s68 = sphi 0, %s65
      %s69 = sphi 0, %s68
      %s85 = sphi 0, %s69
      %s89 = sphi 0, %s89
      %s91 = sphi 0, %s89
      %s92 = sphi 0, %s91
      %s106 = sphi 0, %s92
      %s110 = sphi 0, %s110
      %s112 = sphi 0, %s110
      %s113 = sphi 0, %s112
      %s127 = sphi 0, %s113
      %s131 = sphi 0, %s131
      %s133 = sphi 0, %s131
      %s134 = sphi 0, %s133
      %s148 = sphi 0, %s134
      %s154 = sphi 0, %s156
      %s157 = sphi 0, %s154
      %s158 = sphi 0, %s157
      %s174 = sphi 0, %s158
      %s180 = sphi 0, %s182
      %s183 = sphi 0, %s180
      %s184 = sphi 0, %s183
      %s200 = sphi 0, %s184
    $region4: #{tpu_custom_call.1} parent=1 // loop_header_branch
      %32 = sbr.rel (%p30) target = $region8
    $region5: #{tpu_custom_call.1} parent=1 // loop_body
      %s34 = ssub.s32 %s29, 1
      %s35 = ssub.s32 %s29, 2
      %s36 = sadd.s32 %s29, 1
      %s37 = ssub.s32 %s29, %s36
      %p38 = scmp.eq.s32.totalorder %s37, 0
      %s40 = sadd.s32 %s39, 1
      %s41 = scalar_select %p38, %s39, %s40
      %p44 = pneg %p38
      %p45 = scmp.eq.s32.totalorder %s29, 1
      %p46 = por %p44, %p45
      %p47 = scmp.ne.s32.totalorder %s39, %s42
      %p48 = scmp.eq.s32.totalorder %s29, 0
      %p49 = por %p47, %p48
      %p50 = scmp.ne.s32.totalorder %s39, %s42
      %p51 = scmp.eq.s32.totalorder %s34, 1
      %p52 = por %p50, %p51
      %p53 = scmp.ne.s32.totalorder %s42, %s43
      %p54 = scmp.eq.s32.totalorder %s34, 0
      %p55 = por %p53, %p54
      %p56 = scmp.ne.s32.totalorder %s42, %s43
      %p57 = scmp.eq.s32.totalorder %s35, 1
      %p58 = por %p56, %p57
      %p60 = scmp.ne.s32.totalorder %s43, %s59
      %p61 = scmp.eq.s32.totalorder %s35, 0
      %p62 = por %p60, %p61
      %s63 = ssub.s32 %s29, %s36
      %p64 = scmp.eq.s32.totalorder %s63, 0
      %s66 = sadd.s32 %s65, 1
      %s67 = scalar_select %p64, %s65, %s66
      %p70 = pneg %p64
      %p71 = scmp.eq.s32.totalorder %s29, 1
      %p72 = por %p70, %p71
      %p73 = scmp.ne.s32.totalorder %s65, %s68
      %p74 = scmp.eq.s32.totalorder %s29, 0
      %p75 = por %p73, %p74
      %p76 = scmp.ne.s32.totalorder %s65, %s68
      %p77 = scmp.eq.s32.totalorder %s34, 1
      %p78 = por %p76, %p77
      %p79 = scmp.ne.s32.totalorder %s68, %s69
      %p80 = scmp.eq.s32.totalorder %s34, 0
      %p81 = por %p79, %p80
      %p82 = scmp.ne.s32.totalorder %s68, %s69
      %p83 = scmp.eq.s32.totalorder %s35, 1
      %p84 = por %p82, %p83
      %p86 = scmp.ne.s32.totalorder %s69, %s85
      %p87 = scmp.eq.s32.totalorder %s35, 0
      %p88 = por %p86, %p87
      %s90 = sadd.s32 %s89, 1
      %p93 = scmp.eq.s32.totalorder %s29, 1
      %p94 = scmp.ne.s32.totalorder %s89, %s91
      %p95 = scmp.eq.s32.totalorder %s29, 0
      %p96 = por %p94, %p95
      %p97 = scmp.ne.s32.totalorder %s89, %s91
      %p98 = scmp.eq.s32.totalorder %s34, 1
      %p99 = por %p97, %p98
      %p100 = scmp.ne.s32.totalorder %s91, %s92
      %p101 = scmp.eq.s32.totalorder %s34, 0
      %p102 = por %p100, %p101
      %p103 = scmp.ne.s32.totalorder %s91, %s92
      %p104 = scmp.eq.s32.totalorder %s35, 1
      %p105 = por %p103, %p104
      %p107 = scmp.ne.s32.totalorder %s92, %s106
      %p108 = scmp.eq.s32.totalorder %s35, 0
      %p109 = por %p107, %p108
      %s111 = sadd.s32 %s110, 1
      %p114 = scmp.eq.s32.totalorder %s29, 1
      %p115 = scmp.ne.s32.totalorder %s110, %s112
      %p116 = scmp.eq.s32.totalorder %s29, 0
      %p117 = por %p115, %p116
      %p118 = scmp.ne.s32.totalorder %s110, %s112
      %p119 = scmp.eq.s32.totalorder %s34, 1
      %p120 = por %p118, %p119
      %p121 = scmp.ne.s32.totalorder %s112, %s113
      %p122 = scmp.eq.s32.totalorder %s34, 0
      %p123 = por %p121, %p122
      %p124 = scmp.ne.s32.totalorder %s112, %s113
      %p125 = scmp.eq.s32.totalorder %s35, 1
      %p126 = por %p124, %p125
      %p128 = scmp.ne.s32.totalorder %s113, %s127
      %p129 = scmp.eq.s32.totalorder %s35, 0
      %p130 = por %p128, %p129
      %s132 = sadd.s32 %s131, 1
      %p135 = scmp.eq.s32.totalorder %s29, 1
      %p136 = scmp.ne.s32.totalorder %s131, %s133
      %p137 = scmp.eq.s32.totalorder %s29, 0
      %p138 = por %p136, %p137
      %p139 = scmp.ne.s32.totalorder %s131, %s133
      %p140 = scmp.eq.s32.totalorder %s34, 1
      %p141 = por %p139, %p140
      %p142 = scmp.ne.s32.totalorder %s133, %s134
      %p143 = scmp.eq.s32.totalorder %s34, 0
      %p144 = por %p142, %p143
      %p145 = scmp.ne.s32.totalorder %s133, %s134
      %p146 = scmp.eq.s32.totalorder %s35, 1
      %p147 = por %p145, %p146
      %p149 = scmp.ne.s32.totalorder %s134, %s148
      %p150 = scmp.eq.s32.totalorder %s35, 0
      %p151 = por %p149, %p150
      %s152 = ssub.s32 %s29, %s36
      %p153 = scmp.eq.s32.totalorder %s152, 0
      %s155 = sadd.s32 %s154, 1
      %s156 = scalar_select %p153, %s154, %s155
      %p159 = pneg %p153
      %p160 = scmp.eq.s32.totalorder %s29, 1
      %p161 = por %p159, %p160
      %p162 = scmp.ne.s32.totalorder %s154, %s157
      %p163 = scmp.eq.s32.totalorder %s29, 0
      %p164 = por %p162, %p163
      %p165 = scmp.ne.s32.totalorder %s154, %s157
      %p166 = scmp.eq.s32.totalorder %s34, 1
      %p167 = por %p165, %p166
      %p168 = scmp.ne.s32.totalorder %s157, %s158
      %p169 = scmp.eq.s32.totalorder %s34, 0
      %p170 = por %p168, %p169
      %p171 = scmp.ne.s32.totalorder %s157, %s158
      %p172 = scmp.eq.s32.totalorder %s35, 1
      %p173 = por %p171, %p172
      %p175 = scmp.ne.s32.totalorder %s158, %s174
      %p176 = scmp.eq.s32.totalorder %s35, 0
      %p177 = por %p175, %p176
      %s178 = ssub.s32 %s29, %s36
      %p179 = scmp.eq.s32.totalorder %s178, 0
      %s181 = sadd.s32 %s180, 1
      %s182 = scalar_select %p179, %s180, %s181
      %p185 = pneg %p179
      %p186 = scmp.eq.s32.totalorder %s29, 1
      %p187 = por %p185, %p186
      %p188 = scmp.ne.s32.totalorder %s180, %s183
      %p189 = scmp.eq.s32.totalorder %s29, 0
      %p190 = por %p188, %p189
      %p191 = scmp.ne.s32.totalorder %s180, %s183
      %p192 = scmp.eq.s32.totalorder %s34, 1
      %p193 = por %p191, %p192
      %p194 = scmp.ne.s32.totalorder %s183, %s184
      %p195 = scmp.eq.s32.totalorder %s34, 0
      %p196 = por %p194, %p195
      %p197 = scmp.ne.s32.totalorder %s183, %s184
      %p198 = scmp.eq.s32.totalorder %s35, 1
      %p199 = por %p197, %p198
      %p201 = scmp.ne.s32.totalorder %s184, %s200
      %p202 = scmp.eq.s32.totalorder %s35, 0
      %p203 = por %p201, %p202
      %p204 = scmp.le.s32.totalorder 1, %s29
      %p205 = scmp.lt.s32.totalorder %s29, 3
      %p206 = pnand %p204, %p205
      %p207 = pneg %p206
      // Predicated region
      $region9: #{tpu_custom_call.1} parent=5 // pred_check
        _
      $region10: #{tpu_custom_call.1} parent=5 // pred_check_branch
        %209 = sbr.rel (%p206) target = $region12
      $region11: #{tpu_custom_call.1} parent=5 // pred_region
        %s210 = ssub.s32 %s29, 1
        // Predicated region
        $region13: #{tpu_custom_call.1} parent=11 // pred_check
          %p211 = pneg %p102
        $region14: #{tpu_custom_call.1} parent=11 // pred_check_branch
          %213 = sbr.rel (%p211) target = $region16
        $region15: #{tpu_custom_call.1} parent=11 // pred_region
          %215 = vsyncadd [#allocation7], 0
          %s216 = sshll.u32 %s3, 4
          %s217 = int_to_ptr.hbm [resolvable:$true] %s216
          %s218 = sshll.u32 [#allocation8], 4
          %s219 = int_to_ptr.vmem [resolvable:$true] %s218
          %224 = dma.hbm_to_vmem [thread:$0]  %s217, 512, %s219, [#allocation7], 128, 128, 8
        $region16: #{tpu_custom_call.1} parent=11 // pred_fallthru
          _
        // Predicated region
        $region17: #{tpu_custom_call.1} parent=11 // pred_check
          %p225 = pneg %p123
        $region18: #{tpu_custom_call.1} parent=11 // pred_check_branch
          %227 = sbr.rel (%p225) target = $region20
        $region19: #{tpu_custom_call.1} parent=11 // pred_region
          _
        $region20: #{tpu_custom_call.1} parent=11 // pred_fallthru
          _
        // Predicated region
        $region21: #{tpu_custom_call.1} parent=11 // pred_check
          %p228 = pneg %p144
        $region22: #{tpu_custom_call.1} parent=11 // pred_check_branch
          %230 = sbr.rel (%p228) target = $region24
        $region23: #{tpu_custom_call.1} parent=11 // pred_region
          %232 = vsyncadd [#allocation10], 0
          %s233 = sshll.u32 %s5, 4
          %s234 = int_to_ptr.hbm [resolvable:$true] %s233
          %s235 = sshll.u32 [#allocation9], 4
          %s236 = int_to_ptr.vmem [resolvable:$true] %s235
          %241 = dma.hbm_to_vmem [thread:$0]  %s234, 1280, %s236, [#allocation10], 256, 256, 16
        $region24: #{tpu_custom_call.1} parent=11 // pred_fallthru
          _
      $region12: #{tpu_custom_call.1} parent=5 // pred_fallthru
        _
      %p242 = scmp.lt.s32.totalorder %s29, 2
      // Predicated region
      $region25: #{tpu_custom_call.1} parent=5 // pred_check
        %p243 = pneg %p242
      $region26: #{tpu_custom_call.1} parent=5 // pred_check_branch
        %245 = sbr.rel (%p243) target = $region28
      $region27: #{tpu_custom_call.1} parent=5 // pred_region
        // Predicated region
        $region29: #{tpu_custom_call.1} parent=27 // pred_check
          %p246 = pneg %p49
        $region30: #{tpu_custom_call.1} parent=27 // pred_check_branch
          %248 = sbr.rel (%p246) target = $region32
        $region31: #{tpu_custom_call.1} parent=27 // pred_region
          %s249 = sand.u32 %s39, 1
          %s250 = scalar_lea.sflag [#allocation5], %s249
          %s251 = sand.u32 %s39, 1
          %s252 = smul.addr %s251, 8
          %s253 = scalar_lea.vmem [#allocation4], %s252
          %255 = vsyncadd %s250, 0
          %s256 = smul.addr %s29, 8
          %s257 = scalar_lea.hbm %s1, %s256
          %s259 = sshll.u32 %s257, 4
          %s260 = int_to_ptr.hbm [resolvable:$true] %s259
          %s261 = sshll.u32 %s253, 4
          %s262 = int_to_ptr.vmem [resolvable:$true] %s261
          %264 = dma.hbm_to_vmem [thread:$0]  %s260, 128, %s262, %s250
        $region32: #{tpu_custom_call.1} parent=27 // pred_fallthru
          _
        // Predicated region
        $region33: #{tpu_custom_call.1} parent=27 // pred_check
          %p265 = pneg %p75
        $region34: #{tpu_custom_call.1} parent=27 // pred_check_branch
          %267 = sbr.rel (%p265) target = $region36
        $region35: #{tpu_custom_call.1} parent=27 // pred_region
          %s268 = sand.u32 %s29, 1
          %s269 = scalar_lea.sflag [#allocation7], %s268
          %s270 = sand.u32 %s65, 1
          %s271 = smul.addr %s270, 8
          %s272 = scalar_lea.vmem [#allocation6], %s271
          %274 = vsyncadd %s269, 0
          %s275 = smul.addr %s29, 8
          %s276 = scalar_lea.hbm %s2, %s275
          %s278 = sshll.u32 %s276, 4
          %s279 = int_to_ptr.hbm [resolvable:$true] %s278
          %s280 = sshll.u32 %s272, 4
          %s281 = int_to_ptr.vmem [resolvable:$true] %s280
          %283 = dma.hbm_to_vmem [thread:$0]  %s279, 128, %s281, %s269
        $region36: #{tpu_custom_call.1} parent=27 // pred_fallthru
          _
      $region28: #{tpu_custom_call.1} parent=5 // pred_fallthru
        _
      %p284 = scmp.le.s32.totalorder 1, %s29
      %p285 = scmp.lt.s32.totalorder %s29, 3
      %p286 = pnand %p284, %p285
      %p287 = pneg %p286
      // Predicated region
      $region37: #{tpu_custom_call.1} parent=5 // pred_check
        _
      $region38: #{tpu_custom_call.1} parent=5 // pred_check_branch
        %289 = sbr.rel (%p286) target = $region40
      $region39: #{tpu_custom_call.1} parent=5 // pred_region
        %s290 = ssub.s32 %s29, 1
        %s291 = sand.u32 %s42, 1
        %s292 = scalar_lea.sflag [#allocation5], %s291
        %s293 = sand.u32 %s42, 1
        %s294 = smul.addr %s293, 8
        %s295 = scalar_lea.vmem [#allocation4], %s294
        // Predicated region
        $region41: #{tpu_custom_call.1} parent=39 // pred_check
          %p296 = pneg %p55
        $region42: #{tpu_custom_call.1} parent=39 // pred_check_branch
          %298 = sbr.rel (%p296) target = $region44
        $region43: #{tpu_custom_call.1} parent=39 // pred_region
          %300 = dma.done %s292, 128
        $region44: #{tpu_custom_call.1} parent=39 // pred_fallthru
          _
        %s301 = sand.u32 %s34, 1
        %s302 = scalar_lea.sflag [#allocation7], %s301
        %s303 = sand.u32 %s68, 1
        %s304 = smul.addr %s303, 8
        %s305 = scalar_lea.vmem [#allocation6], %s304
        // Predicated region
        $region45: #{tpu_custom_call.1} parent=39 // pred_check
          %p306 = pneg %p81
        $region46: #{tpu_custom_call.1} parent=39 // pred_check_branch
          %308 = sbr.rel (%p306) target = $region48
        $region47: #{tpu_custom_call.1} parent=39 // pred_region
          %310 = dma.done %s302, 128
        $region48: #{tpu_custom_call.1} parent=39 // pred_fallthru
          _
        // Predicated region
        $region49: #{tpu_custom_call.1} parent=39 // pred_check
          %p311 = pneg %p102
        $region50: #{tpu_custom_call.1} parent=39 // pred_check_branch
          %313 = sbr.rel (%p311) target = $region52
        $region51: #{tpu_custom_call.1} parent=39 // pred_region
          %315 = dma.done [#allocation7], 512
        $region52: #{tpu_custom_call.1} parent=39 // pred_fallthru
          _
        // Predicated region
        $region53: #{tpu_custom_call.1} parent=39 // pred_check
          %p316 = pneg %p144
        $region54: #{tpu_custom_call.1} parent=39 // pred_check_branch
          %318 = sbr.rel (%p316) target = $region56
        $region55: #{tpu_custom_call.1} parent=39 // pred_region
          %320 = dma.done [#allocation10], 1280
        $region56: #{tpu_custom_call.1} parent=39 // pred_fallthru
          _
        %s321 = sand.u32 %s42, 1
        %s322 = scalar_lea.sflag [#allocation5], %s321
        %s323 = sand.u32 %s42, 1
        %s324 = smul.addr %s323, 8
        %s325 = scalar_lea.vmem [#allocation4], %s324
        %p326 = pneg %p55
        %p327 = pneg %p52
        %s328 = sand.u32 %s34, 1
        %s329 = scalar_lea.sflag [#allocation7], %s328
        %s330 = sand.u32 %s68, 1
        %s331 = smul.addr %s330, 8
        %s332 = scalar_lea.vmem [#allocation6], %s331
        %p333 = pneg %p81
        %p334 = pneg %p78
        %p335 = pneg %p102
        %p336 = pneg %p99
        %p337 = pneg %p123
        %p338 = pneg %p120
        %p339 = pneg %p144
        %p340 = pneg %p141
        %p341 = pneg %p170
        %p342 = pneg %p167
        %p343 = scmp.lt.s32.totalorder %s34, 1
        %s344 = scalar_select %p343, %s34, 1
        %s345 = smul.addr %s344, 5
        %s346 = smul.addr %s345, 8
        %s347 = scalar_lea.vmem %s6, %s346
        %p348 = pneg %p196
        %p349 = pneg %p193
        %p350 = scmp.lt.s32.totalorder %s34, 1
        %s351 = scalar_select %p350, %s34, 1
        %s352 = scalar_lea.vmem %s7, %s351
        %p353 = scmp.lt.s32.totalorder %s34, 1
        %s354 = scalar_select %p353, %s34, 1
        %s355 = smul.addr %s354, 5
        %s356 = smul.addr %s355, 8
        %s357 = scalar_lea.vmem %s6, %s356
        %p358 = scmp.lt.s32.totalorder %s34, 1
        %s359 = scalar_select %p358, %s34, 1
        %s360 = scalar_lea.vmem %s7, %s359
        %v361 = vld [vmem:[%s295] sm:$0xff]
        %v362 = vld [vmem:[#allocation8] sm:$0xff]
        %v363 = vld [vmem:[#allocation8 + $0x8] sm:$0xff]
        %v364 = vld [vmem:[#allocation8 + $0x10] sm:$0xff]
        %v365 = vld [vmem:[#allocation8 + $0x18] sm:$0xff]
        %v366 = vld [vmem:[%s4] sm:$0x1]
        %v368 = vperm.slane %v366, 0
        %vm370 = vcmask 261120
        %v372 = vsel %vm370, %v361, 0
        %374 = vmatpush.msra.mxu0 0.0
        %375 = vmatpush.msra.mxu0 0.0
        %376 = vmatpush.msra.mxu0 0.0
        %377 = vmatpush.msra.mxu0 0.0
        %378 = vmatpush.msra.mxu0 0.0
        %379 = vmatpush.msra.mxu0 0.0
        %380 = vmatpush.msra.mxu0 0.0
        %381 = vmatpush.msra.mxu0 0.0
        %382 = vmatpush.msra.mxu0 0.0
        %383 = vmatpush.msra.mxu0 0.0
        %384 = vmatpush.msra.mxu0 0.0
        %385 = vmatpush.msra.mxu0 0.0
        %386 = vmatpush.msra.mxu0 %v365
        %387 = vmatpush.msra.mxu0 %v364
        %388 = vmatpush.msra.mxu0 %v363
        %389 = vmatpush.msra.mxu0 %v362
        %390 = vmatmul.f32.gmra.mxu0 %v372
        %v391 = vpop.f32.mrf.mxu0
        %v392 = vadd.f32 %v368, %v391
        %393 = vdwg.mxu0
        %v394 = vld [vmem:[#allocation9] sm:$0xff]
        %v395 = vld [vmem:[#allocation9 + $0x8] sm:$0xff]
        %v396 = vld [vmem:[#allocation9 + $0x10] sm:$0xff]
        %v397 = vld [vmem:[#allocation9 + $0x18] sm:$0xff]
        %v398 = vld [vmem:[#allocation9 + $0x20] sm:$0xff]
        %v399 = vld [vmem:[#allocation9 + $0x28] sm:$0xff]
        %v400 = vld [vmem:[#allocation9 + $0x30] sm:$0xff]
        %v401 = vld [vmem:[#allocation9 + $0x38] sm:$0xff]
        %v402 = vld [vmem:[#allocation9 + $0x40] sm:$0x1]
        %v403 = vld [vmem:[#allocation9 + $0x48] sm:$0x1]
        %vm404 = vcmask 269312
        %v406 = vsel %vm404, %v392, 0
        %vm408 = vcmask 1040384
        %v410 = vsel %vm408, %v402, 0
        %v413 = vsel %vm408, %v403, 0
        %415 = vmatpush.msra.mxu0 0.0
        %416 = vmatpush.msra.mxu0 0.0
        %417 = vmatpush.msra.mxu0 0.0
        %418 = vmatpush.msra.mxu0 0.0
        %419 = vmatpush.msra.mxu0 0.0
        %420 = vmatpush.msra.mxu0 0.0
        %421 = vmatpush.msra.mxu0 0.0
        %422 = vmatpush.msra.mxu0 0.0
        %423 = vmatpush.msra.mxu0 0.0
        %424 = vmatpush.msra.mxu0 0.0
        %425 = vmatpush.msra.mxu0 0.0
        %426 = vmatpush.msra.mxu0 %v410
        %427 = vmatpush.msra.mxu0 %v400
        %428 = vmatpush.msra.mxu0 %v398
        %429 = vmatpush.msra.mxu0 %v396
        %430 = vmatpush.msra.mxu0 %v394
        %431 = vmatmul.f32.gmra.mxu0 %v406
        %v432 = vpop.f32.mrf.mxu0
        %v433 = vadd.f32 0.0, %v432
        %434 = vdwg.mxu0
        %435 = vmatpush.msra.mxu0 0.0
        %436 = vmatpush.msra.mxu0 0.0
        %437 = vmatpush.msra.mxu0 0.0
        %438 = vmatpush.msra.mxu0 0.0
        %439 = vmatpush.msra.mxu0 0.0
        %440 = vmatpush.msra.mxu0 0.0
        %441 = vmatpush.msra.mxu0 0.0
        %442 = vmatpush.msra.mxu0 0.0
        %443 = vmatpush.msra.mxu0 0.0
        %444 = vmatpush.msra.mxu0 0.0
        %445 = vmatpush.msra.mxu0 0.0
        %446 = vmatpush.msra.mxu0 %v413
        %447 = vmatpush.msra.mxu0 %v401
        %448 = vmatpush.msra.mxu0 %v399
        %449 = vmatpush.msra.mxu0 %v397
        %450 = vmatpush.msra.mxu0 %v395
        %451 = vmatmul.f32.gmra.mxu0 %v406
        %v452 = vpop.f32.mrf.mxu0
        %v453 = vadd.f32 0.0, %v452
        %454 = vdwg.mxu0
        %v455 = vld [vmem:[%s305] sm:$0xff]
        %vm456 = vcmp.lt.s32.totalorder %v455, 4
        %v457 = vsel %vm456, %v455, 4
        %458 = vrot.lane.b32.xlu0 %v392, 95
        %v459 = vpop.permute.xlu0 %458
        %v461 = vsel %vm404, %v433, 0
        %v463 = vsel %vm404, %v459, 0
        %465 = vmatpush.xpose.msra.mxu0 0.0
        %466 = vmatpush.xpose.msra.mxu0 0.0
        %467 = vmatpush.xpose.msra.mxu0 0.0
        %468 = vmatpush.xpose.msra.mxu0 0.0
        %469 = vmatpush.xpose.msra.mxu0 0.0
        %470 = vmatpush.xpose.msra.mxu0 0.0
        %471 = vmatpush.xpose.msra.mxu0 0.0
        %472 = vmatpush.xpose.msra.mxu0 0.0
        %473 = vmatpush.xpose.msra.mxu0 0.0
        %474 = vmatpush.xpose.msra.mxu0 0.0
        %475 = vmatpush.xpose.msra.mxu0 0.0
        %476 = vmatpush.xpose.msra.mxu0 0.0
        %477 = vmatpush.xpose.msra.mxu0 0.0
        %478 = vmatpush.xpose.msra.mxu0 0.0
        %479 = vmatpush.xpose.msra.mxu0 0.0
        %480 = vmatpush.xpose.msra.mxu0 %v463
        %481 = vmatmul.f32.gmra.mxu0 %v461
        %v482 = vpop.f32.mrf.mxu0
        %v483 = vadd.f32 0.0, %v482
        %484 = vdwg.mxu0
        %vm485 = vcmask 64512
        %486 = vst.msk [vmem:[%s357] sm:$0xff] %vm485, %v483
        %vm487 = vcmp.eq.s32.totalorder %v457, 0
        %v488 = vsel %vm487, %v483, 0.0
        %v489 = vadd.f32 %v488, 0.0
        %490 = vrot.lane.b32.xlu0 %v433, 95
        %v491 = vpop.permute.xlu0 %490
        %v492 = vsel %vm404, %v491, 0
        %494 = vmatpush.xpose.msra.mxu0 0.0
        %495 = vmatpush.xpose.msra.mxu0 0.0
        %496 = vmatpush.xpose.msra.mxu0 0.0
        %497 = vmatpush.xpose.msra.mxu0 0.0
        %498 = vmatpush.xpose.msra.mxu0 0.0
        %499 = vmatpush.xpose.msra.mxu0 0.0
        %500 = vmatpush.xpose.msra.mxu0 0.0
        %501 = vmatpush.xpose.msra.mxu0 0.0
        %502 = vmatpush.xpose.msra.mxu0 0.0
        %503 = vmatpush.xpose.msra.mxu0 0.0
        %504 = vmatpush.xpose.msra.mxu0 0.0
        %505 = vmatpush.xpose.msra.mxu0 0.0
        %506 = vmatpush.xpose.msra.mxu0 0.0
        %507 = vmatpush.xpose.msra.mxu0 0.0
        %508 = vmatpush.xpose.msra.mxu0 0.0
        %509 = vmatpush.xpose.msra.mxu0 %v463
        %510 = vmatmul.f32.gmra.mxu0 %v492
        %v511 = vpop.f32.mrf.mxu0
        %v512 = vadd.f32 0.0, %v511
        %513 = vdwg.mxu0
        %514 = vst.msk [vmem:[%s357 + $0x8] sm:$0xff] %vm485, %v512
        %v515 = vmax.f32 %v483, %v512
        %vm516 = vcmp.eq.s32.totalorder %v457, 1
        %v517 = vsel %vm516, %v512, 0.0
        %v518 = vadd.f32 %v489, %v517
        %519 = vrot.lane.b32.xlu0 %v433, 62
        %v520 = vpop.permute.xlu0 %519
        %v521 = vsel %vm404, %v520, 0
        %523 = vmatpush.xpose.msra.mxu0 0.0
        %524 = vmatpush.xpose.msra.mxu0 0.0
        %525 = vmatpush.xpose.msra.mxu0 0.0
        %526 = vmatpush.xpose.msra.mxu0 0.0
        %527 = vmatpush.xpose.msra.mxu0 0.0
        %528 = vmatpush.xpose.msra.mxu0 0.0
        %529 = vmatpush.xpose.msra.mxu0 0.0
        %530 = vmatpush.xpose.msra.mxu0 0.0
        %531 = vmatpush.xpose.msra.mxu0 0.0
        %532 = vmatpush.xpose.msra.mxu0 0.0
        %533 = vmatpush.xpose.msra.mxu0 0.0
        %534 = vmatpush.xpose.msra.mxu0 0.0
        %535 = vmatpush.xpose.msra.mxu0 0.0
        %536 = vmatpush.xpose.msra.mxu0 0.0
        %537 = vmatpush.xpose.msra.mxu0 0.0
        %538 = vmatpush.xpose.msra.mxu0 %v463
        %539 = vmatmul.f32.gmra.mxu0 %v521
        %v540 = vpop.f32.mrf.mxu0
        %v541 = vadd.f32 0.0, %v540
        %542 = vdwg.mxu0
        %543 = vst.msk [vmem:[%s357 + $0x10] sm:$0xff] %vm485, %v541
        %v544 = vmax.f32 %v515, %v541
        %vm545 = vcmp.eq.s32.totalorder %v457, 2
        %v546 = vsel %vm545, %v541, 0.0
        %v547 = vadd.f32 %v518, %v546
        %549 = vrot.lane.b32.xlu0 %v433, 29
        %v550 = vpop.permute.xlu0 %549
        %551 = vrot.lane.b32.xlu0 %v453, 29
        %v552 = vpop.permute.xlu0 %551
        %vm553 = vcmask 236544
        %v554 = vsel %vm553, %v550, %v552
        %v555 = vsel %vm404, %v554, 0
        %557 = vmatpush.xpose.msra.mxu0 0.0
        %558 = vmatpush.xpose.msra.mxu0 0.0
        %559 = vmatpush.xpose.msra.mxu0 0.0
        %560 = vmatpush.xpose.msra.mxu0 0.0
        %561 = vmatpush.xpose.msra.mxu0 0.0
        %562 = vmatpush.xpose.msra.mxu0 0.0
        %563 = vmatpush.xpose.msra.mxu0 0.0
        %564 = vmatpush.xpose.msra.mxu0 0.0
        %565 = vmatpush.xpose.msra.mxu0 0.0
        %566 = vmatpush.xpose.msra.mxu0 0.0
        %567 = vmatpush.xpose.msra.mxu0 0.0
        %568 = vmatpush.xpose.msra.mxu0 0.0
        %569 = vmatpush.xpose.msra.mxu0 0.0
        %570 = vmatpush.xpose.msra.mxu0 0.0
        %571 = vmatpush.xpose.msra.mxu0 0.0
        %572 = vmatpush.xpose.msra.mxu0 %v463
        %573 = vmatmul.f32.gmra.mxu0 %v555
        %v574 = vpop.f32.mrf.mxu0
        %v575 = vadd.f32 0.0, %v574
        %576 = vdwg.mxu0
        %577 = vst.msk [vmem:[%s357 + $0x18] sm:$0xff] %vm485, %v575
        %v578 = vmax.f32 %v544, %v575
        %vm579 = vcmp.eq.s32.totalorder %v457, 3
        %v580 = vsel %vm579, %v575, 0.0
        %v581 = vadd.f32 %v547, %v580
        %582 = vrot.lane.b32.xlu0 %v453, 124
        %v583 = vpop.permute.xlu0 %582
        %v584 = vsel %vm404, %v583, 0
        %586 = vmatpush.xpose.msra.mxu0 0.0
        %587 = vmatpush.xpose.msra.mxu0 0.0
        %588 = vmatpush.xpose.msra.mxu0 0.0
        %589 = vmatpush.xpose.msra.mxu0 0.0
        %590 = vmatpush.xpose.msra.mxu0 0.0
        %591 = vmatpush.xpose.msra.mxu0 0.0
        %592 = vmatpush.xpose.msra.mxu0 0.0
        %593 = vmatpush.xpose.msra.mxu0 0.0
        %594 = vmatpush.xpose.msra.mxu0 0.0
        %595 = vmatpush.xpose.msra.mxu0 0.0
        %596 = vmatpush.xpose.msra.mxu0 0.0
        %597 = vmatpush.xpose.msra.mxu0 0.0
        %598 = vmatpush.xpose.msra.mxu0 0.0
        %599 = vmatpush.xpose.msra.mxu0 0.0
        %600 = vmatpush.xpose.msra.mxu0 0.0
        %601 = vmatpush.xpose.msra.mxu0 %v463
        %602 = vmatmul.f32.gmra.mxu0 %v584
        %v603 = vpop.f32.mrf.mxu0
        %v604 = vadd.f32 0.0, %v603
        %605 = vdwg.mxu0
        %606 = vst.msk [vmem:[%s357 + $0x20] sm:$0xff] %vm485, %v604
        %v607 = vmax.f32 %v578, %v604
        %vm608 = vcmp.eq.s32.totalorder %v457, 4
        %v609 = vsel %vm608, %v604, 0.0
        %v610 = vadd.f32 %v581, %v609
        %v611 = vld [vmem:[%s357] sm:$0xff]
        %v612 = vsub.f32 %v611, %v607
        %v613 = vmul.f32 %v612, 1.442695
        %v614 = vpow.pop %v613
        %v615 = vadd.f32 %v614, 0.0
        %v616 = vld [vmem:[%s357 + $0x8] sm:$0xff]
        %v617 = vsub.f32 %v616, %v607
        %v618 = vmul.f32 %v617, 1.442695
        %v619 = vpow.pop %v618
        %v620 = vadd.f32 %v615, %v619
        %v621 = vld [vmem:[%s357 + $0x10] sm:$0xff]
        %v622 = vsub.f32 %v621, %v607
        %v623 = vmul.f32 %v622, 1.442695
        %v624 = vpow.pop %v623
        %v625 = vadd.f32 %v620, %v624
        %v626 = vld [vmem:[%s357 + $0x18] sm:$0xff]
        %v627 = vsub.f32 %v626, %v607
        %v628 = vmul.f32 %v627, 1.442695
        %v629 = vpow.pop %v628
        %v630 = vadd.f32 %v625, %v629
        %v631 = vld [vmem:[%s357 + $0x20] sm:$0xff]
        %v632 = vsub.f32 %v631, %v607
        %v633 = vmul.f32 %v632, 1.442695
        %v634 = vpow.pop %v633
        %v635 = vadd.f32 %v630, %v634
        %s636 = sld [smem:[#allocation3 + %s34]]
        %v637 = vlaneseq
        %v638 = vshrl.u32 %v637, 7
        %v639 = vlaneseq
        %v640 = vand.u32 %v639, 127
        %v641 = vstv %s636
        %vm642 = vcmp.lt.s32.totalorder %v638, %v641
        %vm643 = vcmp.lt.s32.totalorder %v640, %v641
        %vm644 = vmand %vm642, %vm643
        %vm645 = vcmp.ge.s32.totalorder %v640, %v638
        %vm646 = vmand %vm644, %vm645
        %v647 = vlog2.pop %v635
        %v648 = vmul.f32 %v647, 0.6931472
        %v649 = vadd.f32 %v648, %v607
        %v650 = vsub.f32 %v649, %v610
        %v651 = vsel %vm646, %v650, 0.0
        %v652 = vsel %vm485, %v651, 0.0
        %653 = vadd.xlane.f32.xlu0 %v652
        %v654 = vpop.xlane.xlu0 %653
        %v655 = vrot.slane %v654, 4
        %v656 = vadd.f32 %v654, %v655
        %v657 = vrot.slane %v656, 2
        %v658 = vadd.f32 %v656, %v657
        %v659 = vrot.slane %v658, 1
        %v660 = vadd.f32 %v658, %v659
        %s661 = vtos %v660
        %v662 = vstv %s661
        %vm663 = vcmask 0
        %664 = vst.msk [vmem:[%s360] sm:$0x1] %vm663, %v662
        %p665 = scmp.lt.s32.totalorder %s34, 1
        %s666 = scalar_select %p665, %s34, 1
        %s667 = smul.addr %s666, 5
        %s668 = smul.addr %s667, 8
        %s669 = scalar_lea.vmem %s6, %s668
        %p670 = scmp.lt.s32.totalorder %s34, 1
        %s671 = scalar_select %p670, %s34, 1
        %s672 = scalar_lea.vmem %s7, %s671
        // Predicated region
        $region57: #{tpu_custom_call.1} parent=39 // pred_check
          %p673 = pneg %p167
        $region58: #{tpu_custom_call.1} parent=39 // pred_check_branch
          %675 = sbr.rel (%p673) target = $region60
        $region59: #{tpu_custom_call.1} parent=39 // pred_region
          _
        $region60: #{tpu_custom_call.1} parent=39 // pred_fallthru
          _
        // Predicated region
        $region61: #{tpu_custom_call.1} parent=39 // pred_check
          %p676 = pneg %p193
        $region62: #{tpu_custom_call.1} parent=39 // pred_check_branch
          %678 = sbr.rel (%p676) target = $region64
        $region63: #{tpu_custom_call.1} parent=39 // pred_region
          _
        $region64: #{tpu_custom_call.1} parent=39 // pred_fallthru
          _
      $region40: #{tpu_custom_call.1} parent=5 // pred_fallthru
        _
      %p679 = scmp.le.s32.totalorder 2, %s29
      // Predicated region
      $region65: #{tpu_custom_call.1} parent=5 // pred_check
        %p680 = pneg %p679
      $region66: #{tpu_custom_call.1} parent=5 // pred_check_branch
        %682 = sbr.rel (%p680) target = $region68
      $region67: #{tpu_custom_call.1} parent=5 // pred_region
        %s683 = ssub.s32 %s29, 2
        // Predicated region
        $region69: #{tpu_custom_call.1} parent=67 // pred_check
          %p684 = pneg %p173
        $region70: #{tpu_custom_call.1} parent=67 // pred_check_branch
          %686 = sbr.rel (%p684) target = $region72
        $region71: #{tpu_custom_call.1} parent=67 // pred_region
          %p687 = scmp.lt.s32.totalorder %s35, 1
          %s688 = scalar_select %p687, %s35, 1
          %s689 = smul.addr %s688, 5
          %s690 = smul.addr %s689, 8
          %s691 = scalar_lea.vmem %s6, %s690
        $region72: #{tpu_custom_call.1} parent=67 // pred_fallthru
          _
        // Predicated region
        $region73: #{tpu_custom_call.1} parent=67 // pred_check
          %p692 = pneg %p199
        $region74: #{tpu_custom_call.1} parent=67 // pred_check_branch
          %694 = sbr.rel (%p692) target = $region76
        $region75: #{tpu_custom_call.1} parent=67 // pred_region
          %p695 = scmp.lt.s32.totalorder %s35, 1
          %s696 = scalar_select %p695, %s35, 1
          %s697 = scalar_lea.vmem %s7, %s696
        $region76: #{tpu_custom_call.1} parent=67 // pred_fallthru
          _
      $region68: #{tpu_custom_call.1} parent=5 // pred_fallthru
        _
    $region6: #{tpu_custom_call.1} parent=1 // loop_footer
      %s33 = sadd.s32 1, %s29
    $region7: #{tpu_custom_call.1} parent=1 // loop_footer_branch
      %28 = sbr.rel target = $region3
    $region8: #{tpu_custom_call.1} parent=1 // loop_exit
      _
    %698 = vsyncpa [#allocation5], 1
    %s699 = scalar_lea.sflag [#allocation5], 1
    %700 = vsyncpa %s699, 1
    %701 = vsyncpa [#allocation7], 1
    %s702 = scalar_lea.sflag [#allocation7], 1
    %703 = vsyncpa %s702, 1
    %704 = vsyncpa [#allocation10], 1

</llo_original>
